<compile_context>
chip_gen: v7x
topology: tpu7x:2x2x1
jax: 0.10.0
libtpu: 0.0.40
codegen_flags: <defaults>
</compile_context>

<pallas_src>
import functools

import jax
import jax.numpy as jnp
from jax.experimental import pallas as pl
from jax.experimental.pallas import tpu as pltpu


def _round_up(x, m):
    return (x + m - 1) // m * m


def _unigram_count_embedding_kernel(active_ref, fetch_ref, idsT_ref, inv_ref,
                                    table_ref, out_ref, *, padding_id,
                                    seq_chunk, counts_dtype, n_vocab_tiles):
    """Grid = (batch_tiles, vocab_tiles); vocab (last) axis is the reduction."""
    b = pl.program_id(0)
    k = pl.program_id(1)

    # The output block is resident across the vocab axis (its index_map
    # ignores k) and doubles as the accumulator -> no VMEM scratch needed.
    @pl.when(k == 0)
    def _():
        out_ref[...] = jnp.zeros_like(out_ref)

    is_active = active_ref[b * n_vocab_tiles + k] > 0

    @pl.when(is_active)
    def _():
        s_pad, bt = idsT_ref.shape
        vt = table_ref.shape[0]
        vocab_base = k * vt
        # Global vocab ids covered by this tile; vocab varies along sublanes,
        # batch along lanes.  Hoisted out of the position loop.
        vocab_iota = (jax.lax.broadcasted_iota(jnp.int32, (vt, bt), 0)
                      + vocab_base)

        n_chunks = s_pad // seq_chunk

        def chunk_body(c, countsT):
            s0 = pl.multiple_of(c * seq_chunk, seq_chunk)
            sub = idsT_ref[pl.ds(s0, seq_chunk), :]          # (sc, bt) int32
            if padding_id >= 0:
                # Remap padding to a value that can never match a vocab id
                # (negative padding ids never match the non-negative iota).
                sub = jnp.where(sub == padding_id, jnp.int32(-1), sub)
            # One 2-D compare-add per position: the (1, bt) row is sublane-
            # broadcast against the (vt, bt) vocab grid.  No 3-D one-hot, no
            # cross-sublane (XLU) reduce.
            for j in range(seq_chunk):
                countsT = countsT + (sub[j:j + 1, :] == vocab_iota
                                     ).astype(jnp.float32)
            return countsT

        countsT = jax.lax.fori_loop(0, n_chunks, chunk_body,
                                    jnp.zeros((vt, bt), jnp.float32))

        # out[bt, d] += counts[bt, vt] @ table[vt, d]; counts are held
        # transposed, so contract over the leading dim of both operands.
        out_ref[...] += jax.lax.dot_general(
            countsT.astype(counts_dtype),
            table_ref[...].astype(counts_dtype),
            dimension_numbers=(((0,), (0,)), ((), ())),
            preferred_element_type=jnp.float32)

    @pl.when(k == pl.num_programs(1) - 1)
    def _():
        # Masked-mean epilogue: scale the resident block by 1/num_valid.
        out_ref[...] = out_ref[...] * inv_ref[...]


def unigram_count_embedding(input_ids, table, padding_id=-100,
                            batch_tile=None, vocab_tile=None, seq_chunk=8):
    """UnigramCountEmbedding forward.

    input_ids: [B, S] int,  table: [V, D] float  ->  [B, D] float32.

    Pass `table` as bfloat16 on v6e/v7x to halve the streamed HBM bytes; the
    MXU accumulation stays float32.  Default tile sizes are safe on v5e/v6e
    and on the 64 MiB-VMEM v7x; explicit overrides are the caller's
    responsibility.
    """
    B, S = input_ids.shape
    V, D = table.shape
    itemsize = jnp.dtype(table.dtype).itemsize

    # ---- geometry ----------------------------------------------------------
    d_pad = _round_up(D, 128)                       # lane-dense output / table
    seq_chunk = max(1, min(int(seq_chunk), S))
    s_pad = _round_up(S, seq_chunk)

    # Vocab tile: byte budget (~4 MiB per pipelined table block), 256-aligned.
    TABLE_BLOCK_BYTES = 4 * 1024 * 1024
    if vocab_tile is None:
        vt = TABLE_BLOCK_BYTES // max(1, d_pad * itemsize)
        vt = max(256, (vt // 256) * 256)
    else:
        vt = max(8, (int(vocab_tile) // 8) * 8)
    if vt >= V:
        vt = _round_up(V, 8)                        # single vocab tile
    else:
        # Prefer a slightly smaller tile that divides V exactly so the table
        # needs no padded copy along V.
        best = 0
        cand = (vt // 128) * 128
        while cand >= max(128, vt // 2):
            if V % cand == 0:
                best = cand
                break
            cand -= 128
        if best:
            vt = best
    v_pad = _round_up(V, vt)
    n_vt = v_pad // vt

    # Batch tile: as large as a ~28 MiB row budget allows (fewer batch tiles
    # => fewer full passes over the table).  Must be 128-aligned when there
    # are multiple tiles (it is the lane dim of the transposed-ids block).
    per_row_bytes = 8 * d_pad + 8 * s_pad + 8 * vt
    bt_max = max(128, (28 * 1024 * 1024) // per_row_bytes // 128 * 128)
    b_pad8 = _round_up(B, 8)
    if batch_tile is None:
        if b_pad8 <= bt_max and B < 256:
            bt = b_pad8                              # single tile
        else:
            n_tiles = max(2, -(-B // bt_max))        # >=2 tiles: v7x dual TC
            bt = max(128, min(bt_max, _round_up(-(-B // n_tiles), 128)))
    else:
        bt = max(8, (int(batch_tile) // 8) * 8)
        if bt < b_pad8:
            bt = max(128, (bt // 128) * 128)
        else:
            bt = b_pad8
    b_pad = _round_up(B, bt)
    n_bt = b_pad // bt

    # Counts stay exactly representable if cast to a low-precision table
    # dtype for a full-rate MXU pass; otherwise the dot runs in f32.
    if table.dtype == jnp.float32 or S > 256:
        counts_dtype = jnp.float32
    else:
        counts_dtype = table.dtype

    # ---- operand prep (pad ids always; table only when actually needed) ----
    ids_p = jnp.full((b_pad, s_pad), padding_id, dtype=jnp.int32)
    ids_p = ids_p.at[:B, :S].set(input_ids.astype(jnp.int32))
    idsT = jnp.transpose(ids_p)                      # (s_pad, b_pad)

    if (v_pad, d_pad) != (V, D):
        table_p = jnp.zeros((v_pad, d_pad), dtype=table.dtype)
        table_p = table_p.at[:V, :D].set(table)
    else:
        table_p = table

    # Per-row 1/num_valid (all-padding rows -> 0 instead of NaN).
    n_valid = jnp.sum((ids_p != padding_id).astype(jnp.float32),
                      axis=1, keepdims=True)         # (b_pad, 1)
    inv_n = 1.0 / jnp.maximum(n_valid, 1.0)

    # ---- per-(batch tile, vocab tile) activity (scalar prefetch) -----------
    tile_of = jnp.where(ids_p == padding_id, jnp.int32(-1), ids_p // vt)
    bt_idx = jnp.arange(b_pad, dtype=jnp.int32) // bt
    flat_bt = jnp.broadcast_to(bt_idx[:, None], (b_pad, s_pad)).reshape(-1)
    flat_tile = tile_of.reshape(-1)
    contrib = ((flat_tile >= 0) & (flat_tile < n_vt)).astype(jnp.int32)
    safe_tile = jnp.clip(flat_tile, 0, n_vt - 1)
    hist = jnp.zeros((n_bt, n_vt), jnp.int32).at[flat_bt, safe_tile].add(contrib)
    active = hist > 0                                # (n_bt, n_vt)
    tile_ids = jnp.where(active, jnp.arange(n_vt, dtype=jnp.int32)[None, :],
                         jnp.int32(-1))
    # Inactive tiles reuse the most recent active block index so their table
    # DMA is elided (same block index on consecutive grid steps => no fetch).
    fetch_idx = jnp.maximum(jax.lax.cummax(tile_ids, axis=1), 0)
    active_flat = active.astype(jnp.int32).reshape(-1)
    fetch_flat = fetch_idx.astype(jnp.int32).reshape(-1)

    # ---- VMEM budget --------------------------------------------------------
    needed = (2 * vt * d_pad * itemsize              # table (double-buffered)
              + 2 * bt * d_pad * 4                   # output block buffers
              + 2 * s_pad * bt * 4                   # transposed-ids buffers
              + 2 * bt * vt * 4                      # counts carry + vocab iota
              + 2 * bt * 128 * 4)                    # inv block (lane-padded)
    vmem_limit = int(max(32 * 1024 * 1024, needed + 8 * 1024 * 1024))

    kernel = functools.partial(
        _unigram_count_embedding_kernel,
        padding_id=int(padding_id),
        seq_chunk=seq_chunk,
        counts_dtype=counts_dtype,
        n_vocab_tiles=n_vt,
    )

    out = pl.pallas_call(
        kernel,
        out_shape=jax.ShapeDtypeStruct((b_pad, d_pad), jnp.float32),
        grid_spec=pltpu.PrefetchScalarGridSpec(
            num_scalar_prefetch=2,
            grid=(n_bt, n_vt),
            in_specs=[
                # transposed ids: one batch tile, full sequence, resident
                # across the vocab axis (fetched once per batch tile).
                pl.BlockSpec((s_pad, bt), lambda b, k, act, fid: (0, b)),
                # per-row 1/num_valid for the epilogue.
                pl.BlockSpec((bt, 1), lambda b, k, act, fid: (b, 0)),
                # table: streamed vocab tile; inactive tiles map to the most
                # recent active block index so their DMA is skipped.
                pl.BlockSpec((vt, d_pad),
                             lambda b, k, act, fid: (fid[b * n_vt + k], 0)),
            ],
            out_specs=pl.BlockSpec((bt, d_pad), lambda b, k, act, fid: (b, 0)),
        ),
        compiler_params=pltpu.CompilerParams(
            dimension_semantics=("parallel", "arbitrary"),
            vmem_limit_bytes=vmem_limit,
        ),
    )(active_flat, fetch_flat, idsT, inv_n, table_p)

    if (b_pad, d_pad) != (B, D):
        out = out[:B, :D]
    return out


def _reference(input_ids, table, padding_id=-100):
    emb = table[jnp.clip(input_ids, 0, table.shape[0] - 1)]     # [B, S, D]
    valid = (input_ids != padding_id).astype(jnp.float32)       # [B, S]
    emb = emb * valid[:, :, None]
    return emb.sum(axis=1) / valid.sum(axis=1, keepdims=True)


if __name__ == "__main__":
    B, S, V, D = 2, 8, 64, 32
    padding_id = -100

    key = jax.random.PRNGKey(0)
    k_tab, k_ids = jax.random.split(key)

    # Deterministic "checkpoint-free" embedding table.
    table = jax.random.normal(k_tab, (V, D), dtype=jnp.float32)

    # Token ids with some padding positions (each row keeps valid tokens).
    input_ids = jax.random.randint(k_ids, (B, S), 0, V, dtype=jnp.int32)
    input_ids = input_ids.at[0, -2:].set(padding_id)
    input_ids = input_ids.at[1, -3:].set(padding_id)

    out = unigram_count_embedding(input_ids, table, padding_id=padding_id)
    out = jax.block_until_ready(out)

    ref = _reference(input_ids, table, padding_id=padding_id)
    assert out.shape == (B, D)
    assert jnp.allclose(out, ref, atol=1e-4, rtol=1e-4), "mismatch vs reference"

    print("KERNEL_OK")
</pallas_src>

<mosaic_0001>
module attributes {stable_mosaic.version = 11 : i64} {
  func.func @_unigram_count_embedding_kernel(%arg0: i32, %arg1: i32, %arg2: memref<1xi32, #tpu.memory_space<smem>>, %arg3: memref<1xi32, #tpu.memory_space<smem>>, %arg4: memref<8x8xi32, #tpu.memory_space<vmem>>, %arg5: memref<8x1xf32, #tpu.memory_space<vmem>>, %arg6: memref<64x128xf32, #tpu.memory_space<vmem>>, %arg7: memref<8x128xf32, #tpu.memory_space<vmem>>) attributes {dimension_semantics = [#tpu.dimension_semantics<parallel>, #tpu.dimension_semantics<arbitrary>], iteration_bounds = array<i64: 1, 1>, scalar_prefetch = 2 : i64, scratch_operands = 0 : i64, tpu.core_type = #tpu.core_type<tc>, window_params = [{transform_indices = @transform_0, window_bounds = array<i64: 8, 8>}, {transform_indices = @transform_1, window_bounds = array<i64: 8, 1>}, {transform_indices = @transform_2, window_bounds = array<i64: 64, 128>}, {transform_indices = @transform_3, window_bounds = array<i64: 8, 128>}]} {
    %c0_i32 = arith.constant 0 : i32
    %0 = arith.cmpi eq, %arg1, %c0_i32 : i32
    %1 = arith.extui %0 : i1 to i32
    %c0_i32_0 = arith.constant 0 : i32
    %2 = arith.cmpi ne, %1, %c0_i32_0 : i32
    scf.if %2 {
      %cst = arith.constant 0.000000e+00 : f32
      %13 = vector.broadcast %cst : f32 to vector<8x128xf32>
      %c0 = arith.constant 0 : index
      %c0_5 = arith.constant 0 : index
      %14 = vector.load %arg7[%c0, %c0_5] : memref<8x128xf32, #tpu.memory_space<vmem>>, vector<8x128xf32>
      tpu.vector_store %arg7[%c0, %c0_5], %13 {strides = array<i32>} : memref<8x128xf32, #tpu.memory_space<vmem>>, vector<8x128xf32>,
    } else {
    }
    %c1_i32 = arith.constant 1 : i32
    %3 = arith.muli %arg0, %c1_i32 : i32
    %4 = arith.addi %3, %arg1 : i32
    %5 = arith.index_cast %4 : i32 to index
    %6 = memref.load %arg2[%5] : memref<1xi32, #tpu.memory_space<smem>>
    %c0_i32_1 = arith.constant 0 : i32
    %7 = arith.cmpi sgt, %6, %c0_i32_1 : i32
    %8 = arith.extui %7 : i1 to i32
    %c0_i32_2 = arith.constant 0 : i32
    %9 = arith.cmpi ne, %8, %c0_i32_2 : i32
    scf.if %9 {
      %c64_i32 = arith.constant 64 : i32
      %13 = arith.muli %arg1, %c64_i32 : i32
      %14 = tpu.iota {dimensions = array<i32: 0>} : vector<64x8xi32>
      %15 = vector.broadcast %13 : i32 to vector<64x8xi32>
      %16 = arith.addi %14, %15 : vector<64x8xi32>
      %cst = arith.constant 0.000000e+00 : f32
      %17 = vector.broadcast %cst : f32 to vector<64x8xf32>
      %c0_i32_5 = arith.constant 0 : i32
      %c8_i32 = arith.constant 8 : i32
      %18 = arith.muli %c0_i32_5, %c8_i32 : i32
      %19 = tpu.assume_multiple %18, 8 : i32
      %20 = arith.index_cast %19 : i32 to index
      %c0 = arith.constant 0 : index
      %21 = vector.load %arg4[%20, %c0] : memref<8x8xi32, #tpu.memory_space<vmem>>, vector<8x8xi32>
      %22 = vector.extract_strided_slice %21 {offsets = [0, 0], sizes = [1, 8], strides = [1, 1]} : vector<8x8xi32> to vector<1x8xi32>
      %23 = vector.broadcast %22 : vector<1x8xi32> to vector<64x8xi32>
      %24 = arith.cmpi eq, %23, %16 : vector<64x8xi32>
      %25 = arith.extui %24 : vector<64x8xi1> to vector<64x8xi32>
      %26 = arith.sitofp %25 : vector<64x8xi32> to vector<64x8xf32>
      %27 = arith.addf %17, %26 : vector<64x8xf32>
      %28 = vector.extract_strided_slice %21 {offsets = [1, 0], sizes = [1, 8], strides = [1, 1]} : vector<8x8xi32> to vector<1x8xi32>
      %29 = vector.broadcast %28 : vector<1x8xi32> to vector<64x8xi32>
      %30 = arith.cmpi eq, %29, %16 : vector<64x8xi32>
      %31 = arith.extui %30 : vector<64x8xi1> to vector<64x8xi32>
      %32 = arith.sitofp %31 : vector<64x8xi32> to vector<64x8xf32>
      %33 = arith.addf %27, %32 : vector<64x8xf32>
      %34 = vector.extract_strided_slice %21 {offsets = [2, 0], sizes = [1, 8], strides = [1, 1]} : vector<8x8xi32> to vector<1x8xi32>
      %35 = vector.broadcast %34 : vector<1x8xi32> to vector<64x8xi32>
      %36 = arith.cmpi eq, %35, %16 : vector<64x8xi32>
      %37 = arith.extui %36 : vector<64x8xi1> to vector<64x8xi32>
      %38 = arith.sitofp %37 : vector<64x8xi32> to vector<64x8xf32>
      %39 = arith.addf %33, %38 : vector<64x8xf32>
      %40 = vector.extract_strided_slice %21 {offsets = [3, 0], sizes = [1, 8], strides = [1, 1]} : vector<8x8xi32> to vector<1x8xi32>
      %41 = vector.broadcast %40 : vector<1x8xi32> to vector<64x8xi32>
      %42 = arith.cmpi eq, %41, %16 : vector<64x8xi32>
      %43 = arith.extui %42 : vector<64x8xi1> to vector<64x8xi32>
      %44 = arith.sitofp %43 : vector<64x8xi32> to vector<64x8xf32>
      %45 = arith.addf %39, %44 : vector<64x8xf32>
      %46 = vector.extract_strided_slice %21 {offsets = [4, 0], sizes = [1, 8], strides = [1, 1]} : vector<8x8xi32> to vector<1x8xi32>
      %47 = vector.broadcast %46 : vector<1x8xi32> to vector<64x8xi32>
      %48 = arith.cmpi eq, %47, %16 : vector<64x8xi32>
      %49 = arith.extui %48 : vector<64x8xi1> to vector<64x8xi32>
      %50 = arith.sitofp %49 : vector<64x8xi32> to vector<64x8xf32>
      %51 = arith.addf %45, %50 : vector<64x8xf32>
      %52 = vector.extract_strided_slice %21 {offsets = [5, 0], sizes = [1, 8], strides = [1, 1]} : vector<8x8xi32> to vector<1x8xi32>
      %53 = vector.broadcast %52 : vector<1x8xi32> to vector<64x8xi32>
      %54 = arith.cmpi eq, %53, %16 : vector<64x8xi32>
      %55 = arith.extui %54 : vector<64x8xi1> to vector<64x8xi32>
      %56 = arith.sitofp %55 : vector<64x8xi32> to vector<64x8xf32>
      %57 = arith.addf %51, %56 : vector<64x8xf32>
      %58 = vector.extract_strided_slice %21 {offsets = [6, 0], sizes = [1, 8], strides = [1, 1]} : vector<8x8xi32> to vector<1x8xi32>
      %59 = vector.broadcast %58 : vector<1x8xi32> to vector<64x8xi32>
      %60 = arith.cmpi eq, %59, %16 : vector<64x8xi32>
      %61 = arith.extui %60 : vector<64x8xi1> to vector<64x8xi32>
      %62 = arith.sitofp %61 : vector<64x8xi32> to vector<64x8xf32>
      %63 = arith.addf %57, %62 : vector<64x8xf32>
      %64 = vector.extract_strided_slice %21 {offsets = [7, 0], sizes = [1, 8], strides = [1, 1]} : vector<8x8xi32> to vector<1x8xi32>
      %65 = vector.broadcast %64 : vector<1x8xi32> to vector<64x8xi32>
      %66 = arith.cmpi eq, %65, %16 : vector<64x8xi32>
      %67 = arith.extui %66 : vector<64x8xi1> to vector<64x8xi32>
      %68 = arith.sitofp %67 : vector<64x8xi32> to vector<64x8xf32>
      %69 = arith.addf %63, %68 : vector<64x8xf32>
      %c1_i32_6 = arith.constant 1 : i32
      %c0_7 = arith.constant 0 : index
      %c0_8 = arith.constant 0 : index
      %70 = vector.load %arg7[%c0_7, %c0_8] : memref<8x128xf32, #tpu.memory_space<vmem>>, vector<8x128xf32>
      %c0_9 = arith.constant 0 : index
      %c0_10 = arith.constant 0 : index
      %71 = vector.load %arg6[%c0_9, %c0_10] : memref<64x128xf32, #tpu.memory_space<vmem>>, vector<64x128xf32>
      %cst_11 = arith.constant dense<0.000000e+00> : vector<8x128xf32>
      %72 = tpu.matmul %69, %71, %cst_11 {dimension_numbers = #tpu.dot_dimension_numbers<[0], [0], [1], [1], [0, 1, 1, 1], [], []>} : vector<64x8xf32>, vector<64x128xf32>, vector<8x128xf32> -> vector<8x128xf32>
      %73 = arith.addf %70, %72 : vector<8x128xf32>
      %c0_12 = arith.constant 0 : index
      %c0_13 = arith.constant 0 : index
      %74 = vector.load %arg7[%c0_12, %c0_13] : memref<8x128xf32, #tpu.memory_space<vmem>>, vector<8x128xf32>
      tpu.vector_store %arg7[%c0_12, %c0_13], %73 {strides = array<i32>} : memref<8x128xf32, #tpu.memory_space<vmem>>, vector<8x128xf32>,
    } else {
    }
    %c0_i32_3 = arith.constant 0 : i32
    %10 = arith.cmpi eq, %arg1, %c0_i32_3 : i32
    %11 = arith.extui %10 : i1 to i32
    %c0_i32_4 = arith.constant 0 : i32
    %12 = arith.cmpi ne, %11, %c0_i32_4 : i32
    scf.if %12 {
      %c0 = arith.constant 0 : index
      %c0_5 = arith.constant 0 : index
      %13 = vector.load %arg7[%c0, %c0_5] : memref<8x128xf32, #tpu.memory_space<vmem>>, vector<8x128xf32>
      %c0_6 = arith.constant 0 : index
      %c0_7 = arith.constant 0 : index
      %14 = vector.load %arg5[%c0_6, %c0_7] : memref<8x1xf32, #tpu.memory_space<vmem>>, vector<8x1xf32>
      %15 = vector.broadcast %14 : vector<8x1xf32> to vector<8x128xf32>
      %16 = arith.mulf %13, %15 : vector<8x128xf32>
      %c0_8 = arith.constant 0 : index
      %c0_9 = arith.constant 0 : index
      %17 = vector.load %arg7[%c0_8, %c0_9] : memref<8x128xf32, #tpu.memory_space<vmem>>, vector<8x128xf32>
      tpu.vector_store %arg7[%c0_8, %c0_9], %16 {strides = array<i32>} : memref<8x128xf32, #tpu.memory_space<vmem>>, vector<8x128xf32>,
    } else {
    }
    return
  }
  func.func @transform_0(%arg0: i32, %arg1: i32, %arg2: memref<1xi32, #tpu.memory_space<smem>>, %arg3: memref<1xi32, #tpu.memory_space<smem>>) -> (i32, i32) {
    %c0_i32 = arith.constant 0 : i32
    %c0_i32_0 = arith.constant 0 : i32
    return %c0_i32, %arg0 : i32, i32
  }
  func.func @transform_1(%arg0: i32, %arg1: i32, %arg2: memref<1xi32, #tpu.memory_space<smem>>, %arg3: memref<1xi32, #tpu.memory_space<smem>>) -> (i32, i32) {
    %c0_i32 = arith.constant 0 : i32
    %c0_i32_0 = arith.constant 0 : i32
    return %arg0, %c0_i32 : i32, i32
  }
  func.func @transform_2(%arg0: i32, %arg1: i32, %arg2: memref<1xi32, #tpu.memory_space<smem>>, %arg3: memref<1xi32, #tpu.memory_space<smem>>) -> (i32, i32) {
    %c1_i32 = arith.constant 1 : i32
    %0 = arith.muli %arg0, %c1_i32 : i32
    %1 = arith.addi %0, %arg1 : i32
    %2 = arith.index_cast %1 : i32 to index
    %3 = memref.load %arg3[%2] : memref<1xi32, #tpu.memory_space<smem>>
    %c0_i32 = arith.constant 0 : i32
    %c0_i32_0 = arith.constant 0 : i32
    return %3, %c0_i32 : i32, i32
  }
  func.func @transform_3(%arg0: i32, %arg1: i32, %arg2: memref<1xi32, #tpu.memory_space<smem>>, %arg3: memref<1xi32, #tpu.memory_space<smem>>) -> (i32, i32) {
    %c0_i32 = arith.constant 0 : i32
    %c0_i32_0 = arith.constant 0 : i32
    return %arg0, %c0_i32 : i32, i32
  }
}

</mosaic_0001>

<llo_original>
// kernel: tpu_custom_call.1
$region0: #{tpu_custom_call.1}
  #allocation0 [shape = 'u32[]', space=smem, size = 0x4, offset = 0x4, fixed_abs, tag = 'smem constant byte address 0x4 - core index']
  #allocation1 [shape = 'u32[144,128]{1,0:T(1,128)}', space=vmem, size = 0x12000, scoped, tag = 'internal scratch']
  #allocation2 [shape = 's32[1]{0}', space=sflag, size = 0x4, scoped, tag = 'scoped memory for tpu_custom_call.1']
  #allocation3 [shape = 's32[1]{0:T(128)S(6)}', space=smem, size = 0x200, scoped, tag = 'prefetched SMEM operand 0']
  #allocation4 [shape = 's32[1]{0:T(128)S(6)}', space=smem, size = 0x200, scoped, tag = 'prefetched SMEM operand 1']
  %s0 = inlined_call_operand.<no memory space> [shape: s32[1], index: 0, kind: input, shape index: {}]
  %s1 = inlined_call_operand.<no memory space> [shape: s32[1], index: 1, kind: input, shape index: {}]
  %s2 = inlined_call_operand.vmem [shape: s32[8,8], index: 2, kind: input, shape index: {}]
  %s3 = inlined_call_operand.vmem [shape: f32[8,1], index: 3, kind: input, shape index: {}]
  %s4 = inlined_call_operand.hbm [shape: f32[64,128], index: 4, kind: input, shape index: {}]
  %s5 = inlined_call_operand.hbm [shape: f32[8,128], index: 5, kind: output, shape index: {}]
  %s6 = sld [smem:[#allocation0]]
  $region38: #{tpu_custom_call.1} parent=0
    _
  %s8 = ssub.s32 1, %s6
  %s9 = scalar_select 0, %s8, %s6
  %10 = sst [smem:[#allocation3]] %s0
  %11 = sst [smem:[#allocation4]] %s1
  $region1: #{tpu_custom_call.1} parent=0
    #allocation5 [shape = 'u8[32768]{0}', space=vmem, size = 0x8000, scoped, tag = 'input window, operand 4, single buffered']
    #allocation6 [shape = 's32[1]{0}', space=sflag, size = 0x4, scoped, tag = 'scoped memory for tpu_custom_call.1']
    #allocation7 [shape = 's32[1]{0}', space=sflag, size = 0x4, scoped, tag = 'scoped memory for tpu_custom_call.1']
    #allocation8 [shape = 'u8[4096]{0}', space=vmem, size = 0x1000, scoped, tag = 'output window, operand 0, single buffered']
    %12 = vsyncpa [#allocation6], 0
    %13 = vsyncpa [#allocation7], 0
    // Predicated region
    $region2: #{tpu_custom_call.1} parent=1 // pred_check
      _
    $region3: #{tpu_custom_call.1} parent=1 // pred_check_branch
      %15 = sbr.rel (0) target = $region5
    $region4: #{tpu_custom_call.1} parent=1 // pred_region
      _
    $region5: #{tpu_custom_call.1} parent=1 // pred_fallthru
      _
    // Predicated region
    $region6: #{tpu_custom_call.1} parent=1 // pred_check
      _
    $region7: #{tpu_custom_call.1} parent=1 // pred_check_branch
      %17 = sbr.rel (0) target = $region9
    $region8: #{tpu_custom_call.1} parent=1 // pred_region
      _
    $region9: #{tpu_custom_call.1} parent=1 // pred_fallthru
      _
    // Predicated region
    $region10: #{tpu_custom_call.1} parent=1 // pred_check
      _
    $region11: #{tpu_custom_call.1} parent=1 // pred_check_branch
      %19 = sbr.rel (0) target = $region13
    $region12: #{tpu_custom_call.1} parent=1 // pred_region
      %s20 = sadd.s32 0, 0
      %s21 = sld [smem:[#allocation4 + %s20]]
      %s22 = smul.u32 8, %s21
      %s24 = ssub.s32 1024, 1024
      %25 = vsyncadd [#allocation6], %s24
      %s26 = smul.addr %s22, 128
      %s27 = scalar_lea.hbm %s4, %s26
      %s28 = sshll.u32 [#allocation5], 4
      %s29 = int_to_ptr.vmem [resolvable:$true] %s28
      %34 = dma.hbm_to_vmem [thread:$0]  %s27, 1024, %s29, [#allocation6], 128, 128, 8
    $region13: #{tpu_custom_call.1} parent=1 // pred_fallthru
      _
    // Predicated region
    $region14: #{tpu_custom_call.1} parent=1 // pred_check
      _
    $region15: #{tpu_custom_call.1} parent=1 // pred_check_branch
      %36 = sbr.rel (0) target = $region17
    $region16: #{tpu_custom_call.1} parent=1 // pred_region
      %37 = dma.done [#allocation6], 1024
    $region17: #{tpu_custom_call.1} parent=1 // pred_fallthru
      _
    %s38 = sadd.s32 0, 0
    %s39 = sld [smem:[#allocation4 + %s38]]
    %s40 = smul.u32 8, %s39
    %p41 = scmp.eq.s32.totalorder 0, 0
    // Predicated region
    $region18: #{tpu_custom_call.1} parent=1 // pred_check
      %p42 = pneg %p41
    $region19: #{tpu_custom_call.1} parent=1 // pred_check_branch
      %44 = sbr.rel (%p42) target = $region21
    $region20: #{tpu_custom_call.1} parent=1 // pred_region
      %45 = vst [vmem:[#allocation8] sm:$0xff] 0.0
    $region21: #{tpu_custom_call.1} parent=1 // pred_fallthru
      _
    %s46 = sadd.s32 0, 0
    %s47 = sld [smem:[#allocation3 + %s46]]
    %p48 = scmp.gt.s32.totalorder %s47, 0
    // Predicated region
    $region22: #{tpu_custom_call.1} parent=1 // pred_check
      %p49 = pneg %p48
    $region23: #{tpu_custom_call.1} parent=1 // pred_check_branch
      %51 = sbr.rel (%p49) target = $region25
    $region24: #{tpu_custom_call.1} parent=1 // pred_region
      %s52 = smul.u32 0, 64
      %v53 = vlaneseq
      %v54 = vshrl.u32 %v53, 7
      %v55 = vadd.s32 %v54, 8
      %v56 = vadd.s32 %v54, 16
      %v57 = vadd.s32 %v54, 24
      %v58 = vadd.s32 %v54, 32
      %v59 = vadd.s32 %v54, 40
      %v60 = vadd.s32 %v54, 48
      %v61 = vadd.s32 %v54, 56
      %v62 = vstv %s52
      %v63 = vadd.s32 %v54, %v62
      %v64 = vadd.s32 %v55, %v62
      %v65 = vadd.s32 %v56, %v62
      %v66 = vadd.s32 %v57, %v62
      %v67 = vadd.s32 %v58, %v62
      %v68 = vadd.s32 %v59, %v62
      %v69 = vadd.s32 %v60, %v62
      %v70 = vadd.s32 %v61, %v62
      %v71 = vld [vmem:[%s2] sm:$0xff]
      %v72 = vlaneseq
      %v73 = vshrl.u32 %v72, 7
      %v74 = vsub.s32 0, %v73
      %v75 = vrot.slane %v71, %v74
      %vm76 = vcmp.eq.s32.totalorder %v75, %v63
      %vm77 = vcmp.eq.s32.totalorder %v75, %v64
      %vm78 = vcmp.eq.s32.totalorder %v75, %v65
      %vm79 = vcmp.eq.s32.totalorder %v75, %v66
      %vm80 = vcmp.eq.s32.totalorder %v75, %v67
      %vm81 = vcmp.eq.s32.totalorder %v75, %v68
      %vm82 = vcmp.eq.s32.totalorder %v75, %v69
      %vm83 = vcmp.eq.s32.totalorder %v75, %v70
      %v84 = vsel %vm76, 1, 0
      %v85 = vsel %vm77, 1, 0
      %v86 = vsel %vm78, 1, 0
      %v87 = vsel %vm79, 1, 0
      %v88 = vsel %vm80, 1, 0
      %v89 = vsel %vm81, 1, 0
      %v90 = vsel %vm82, 1, 0
      %v91 = vsel %vm83, 1, 0
      %v92 = vcvt.s32.f32 %v84
      %v93 = vcvt.s32.f32 %v85
      %v94 = vcvt.s32.f32 %v86
      %v95 = vcvt.s32.f32 %v87
      %v96 = vcvt.s32.f32 %v88
      %v97 = vcvt.s32.f32 %v89
      %v98 = vcvt.s32.f32 %v90
      %v99 = vcvt.s32.f32 %v91
      %v100 = vadd.f32 %v92, 0.0
      %v101 = vadd.f32 %v93, 0.0
      %v102 = vadd.f32 %v94, 0.0
      %v103 = vadd.f32 %v95, 0.0
      %v104 = vadd.f32 %v96, 0.0
      %v105 = vadd.f32 %v97, 0.0
      %v106 = vadd.f32 %v98, 0.0
      %v107 = vadd.f32 %v99, 0.0
      %v108 = vlaneseq
      %v109 = vshrl.u32 %v108, 7
      %v110 = vsub.s32 1, %v109
      %v111 = vrot.slane %v71, %v110
      %vm112 = vcmp.eq.s32.totalorder %v111, %v63
      %vm113 = vcmp.eq.s32.totalorder %v111, %v64
      %vm114 = vcmp.eq.s32.totalorder %v111, %v65
      %vm115 = vcmp.eq.s32.totalorder %v111, %v66
      %vm116 = vcmp.eq.s32.totalorder %v111, %v67
      %vm117 = vcmp.eq.s32.totalorder %v111, %v68
      %vm118 = vcmp.eq.s32.totalorder %v111, %v69
      %vm119 = vcmp.eq.s32.totalorder %v111, %v70
      %v120 = vsel %vm112, 1, 0
      %v121 = vsel %vm113, 1, 0
      %v122 = vsel %vm114, 1, 0
      %v123 = vsel %vm115, 1, 0
      %v124 = vsel %vm116, 1, 0
      %v125 = vsel %vm117, 1, 0
      %v126 = vsel %vm118, 1, 0
      %v127 = vsel %vm119, 1, 0
      %v128 = vcvt.s32.f32 %v120
      %v129 = vcvt.s32.f32 %v121
      %v130 = vcvt.s32.f32 %v122
      %v131 = vcvt.s32.f32 %v123
      %v132 = vcvt.s32.f32 %v124
      %v133 = vcvt.s32.f32 %v125
      %v134 = vcvt.s32.f32 %v126
      %v135 = vcvt.s32.f32 %v127
      %v136 = vadd.f32 %v100, %v128
      %v137 = vadd.f32 %v101, %v129
      %v138 = vadd.f32 %v102, %v130
      %v139 = vadd.f32 %v103, %v131
      %v140 = vadd.f32 %v104, %v132
      %v141 = vadd.f32 %v105, %v133
      %v142 = vadd.f32 %v106, %v134
      %v143 = vadd.f32 %v107, %v135
      %v144 = vlaneseq
      %v145 = vshrl.u32 %v144, 7
      %v146 = vsub.s32 2, %v145
      %v147 = vrot.slane %v71, %v146
      %vm148 = vcmp.eq.s32.totalorder %v147, %v63
      %vm149 = vcmp.eq.s32.totalorder %v147, %v64
      %vm150 = vcmp.eq.s32.totalorder %v147, %v65
      %vm151 = vcmp.eq.s32.totalorder %v147, %v66
      %vm152 = vcmp.eq.s32.totalorder %v147, %v67
      %vm153 = vcmp.eq.s32.totalorder %v147, %v68
      %vm154 = vcmp.eq.s32.totalorder %v147, %v69
      %vm155 = vcmp.eq.s32.totalorder %v147, %v70
      %v156 = vsel %vm148, 1, 0
      %v157 = vsel %vm149, 1, 0
      %v158 = vsel %vm150, 1, 0
      %v159 = vsel %vm151, 1, 0
      %v160 = vsel %vm152, 1, 0
      %v161 = vsel %vm153, 1, 0
      %v162 = vsel %vm154, 1, 0
      %v163 = vsel %vm155, 1, 0
      %v164 = vcvt.s32.f32 %v156
      %v165 = vcvt.s32.f32 %v157
      %v166 = vcvt.s32.f32 %v158
      %v167 = vcvt.s32.f32 %v159
      %v168 = vcvt.s32.f32 %v160
      %v169 = vcvt.s32.f32 %v161
      %v170 = vcvt.s32.f32 %v162
      %v171 = vcvt.s32.f32 %v163
      %v172 = vadd.f32 %v136, %v164
      %v173 = vadd.f32 %v137, %v165
      %v174 = vadd.f32 %v138, %v166
      %v175 = vadd.f32 %v139, %v167
      %v176 = vadd.f32 %v140, %v168
      %v177 = vadd.f32 %v141, %v169
      %v178 = vadd.f32 %v142, %v170
      %v179 = vadd.f32 %v143, %v171
      %v180 = vlaneseq
      %v181 = vshrl.u32 %v180, 7
      %v182 = vsub.s32 3, %v181
      %v183 = vrot.slane %v71, %v182
      %vm184 = vcmp.eq.s32.totalorder %v183, %v63
      %vm185 = vcmp.eq.s32.totalorder %v183, %v64
      %vm186 = vcmp.eq.s32.totalorder %v183, %v65
      %vm187 = vcmp.eq.s32.totalorder %v183, %v66
      %vm188 = vcmp.eq.s32.totalorder %v183, %v67
      %vm189 = vcmp.eq.s32.totalorder %v183, %v68
      %vm190 = vcmp.eq.s32.totalorder %v183, %v69
      %vm191 = vcmp.eq.s32.totalorder %v183, %v70
      %v192 = vsel %vm184, 1, 0
      %v193 = vsel %vm185, 1, 0
      %v194 = vsel %vm186, 1, 0
      %v195 = vsel %vm187, 1, 0
      %v196 = vsel %vm188, 1, 0
      %v197 = vsel %vm189, 1, 0
      %v198 = vsel %vm190, 1, 0
      %v199 = vsel %vm191, 1, 0
      %v200 = vcvt.s32.f32 %v192
      %v201 = vcvt.s32.f32 %v193
      %v202 = vcvt.s32.f32 %v194
      %v203 = vcvt.s32.f32 %v195
      %v204 = vcvt.s32.f32 %v196
      %v205 = vcvt.s32.f32 %v197
      %v206 = vcvt.s32.f32 %v198
      %v207 = vcvt.s32.f32 %v199
      %v208 = vadd.f32 %v172, %v200
      %v209 = vadd.f32 %v173, %v201
      %v210 = vadd.f32 %v174, %v202
      %v211 = vadd.f32 %v175, %v203
      %v212 = vadd.f32 %v176, %v204
      %v213 = vadd.f32 %v177, %v205
      %v214 = vadd.f32 %v178, %v206
      %v215 = vadd.f32 %v179, %v207
      %v216 = vlaneseq
      %v217 = vshrl.u32 %v216, 7
      %v218 = vsub.s32 4, %v217
      %v219 = vrot.slane %v71, %v218
      %vm220 = vcmp.eq.s32.totalorder %v219, %v63
      %vm221 = vcmp.eq.s32.totalorder %v219, %v64
      %vm222 = vcmp.eq.s32.totalorder %v219, %v65
      %vm223 = vcmp.eq.s32.totalorder %v219, %v66
      %vm224 = vcmp.eq.s32.totalorder %v219, %v67
      %vm225 = vcmp.eq.s32.totalorder %v219, %v68
      %vm226 = vcmp.eq.s32.totalorder %v219, %v69
      %vm227 = vcmp.eq.s32.totalorder %v219, %v70
      %v228 = vsel %vm220, 1, 0
      %v229 = vsel %vm221, 1, 0
      %v230 = vsel %vm222, 1, 0
      %v231 = vsel %vm223, 1, 0
      %v232 = vsel %vm224, 1, 0
      %v233 = vsel %vm225, 1, 0
      %v234 = vsel %vm226, 1, 0
      %v235 = vsel %vm227, 1, 0
      %v236 = vcvt.s32.f32 %v228
      %v237 = vcvt.s32.f32 %v229
      %v238 = vcvt.s32.f32 %v230
      %v239 = vcvt.s32.f32 %v231
      %v240 = vcvt.s32.f32 %v232
      %v241 = vcvt.s32.f32 %v233
      %v242 = vcvt.s32.f32 %v234
      %v243 = vcvt.s32.f32 %v235
      %v244 = vadd.f32 %v208, %v236
      %v245 = vadd.f32 %v209, %v237
      %v246 = vadd.f32 %v210, %v238
      %v247 = vadd.f32 %v211, %v239
      %v248 = vadd.f32 %v212, %v240
      %v249 = vadd.f32 %v213, %v241
      %v250 = vadd.f32 %v214, %v242
      %v251 = vadd.f32 %v215, %v243
      %v252 = vlaneseq
      %v253 = vshrl.u32 %v252, 7
      %v254 = vsub.s32 5, %v253
      %v255 = vrot.slane %v71, %v254
      %vm256 = vcmp.eq.s32.totalorder %v255, %v63
      %vm257 = vcmp.eq.s32.totalorder %v255, %v64
      %vm258 = vcmp.eq.s32.totalorder %v255, %v65
      %vm259 = vcmp.eq.s32.totalorder %v255, %v66
      %vm260 = vcmp.eq.s32.totalorder %v255, %v67
      %vm261 = vcmp.eq.s32.totalorder %v255, %v68
      %vm262 = vcmp.eq.s32.totalorder %v255, %v69
      %vm263 = vcmp.eq.s32.totalorder %v255, %v70
      %v264 = vsel %vm256, 1, 0
      %v265 = vsel %vm257, 1, 0
      %v266 = vsel %vm258, 1, 0
      %v267 = vsel %vm259, 1, 0
      %v268 = vsel %vm260, 1, 0
      %v269 = vsel %vm261, 1, 0
      %v270 = vsel %vm262, 1, 0
      %v271 = vsel %vm263, 1, 0
      %v272 = vcvt.s32.f32 %v264
      %v273 = vcvt.s32.f32 %v265
      %v274 = vcvt.s32.f32 %v266
      %v275 = vcvt.s32.f32 %v267
      %v276 = vcvt.s32.f32 %v268
      %v277 = vcvt.s32.f32 %v269
      %v278 = vcvt.s32.f32 %v270
      %v279 = vcvt.s32.f32 %v271
      %v280 = vadd.f32 %v244, %v272
      %v281 = vadd.f32 %v245, %v273
      %v282 = vadd.f32 %v246, %v274
      %v283 = vadd.f32 %v247, %v275
      %v284 = vadd.f32 %v248, %v276
      %v285 = vadd.f32 %v249, %v277
      %v286 = vadd.f32 %v250, %v278
      %v287 = vadd.f32 %v251, %v279
      %v288 = vlaneseq
      %v289 = vshrl.u32 %v288, 7
      %v290 = vsub.s32 6, %v289
      %v291 = vrot.slane %v71, %v290
      %vm292 = vcmp.eq.s32.totalorder %v291, %v63
      %vm293 = vcmp.eq.s32.totalorder %v291, %v64
      %vm294 = vcmp.eq.s32.totalorder %v291, %v65
      %vm295 = vcmp.eq.s32.totalorder %v291, %v66
      %vm296 = vcmp.eq.s32.totalorder %v291, %v67
      %vm297 = vcmp.eq.s32.totalorder %v291, %v68
      %vm298 = vcmp.eq.s32.totalorder %v291, %v69
      %vm299 = vcmp.eq.s32.totalorder %v291, %v70
      %v300 = vsel %vm292, 1, 0
      %v301 = vsel %vm293, 1, 0
      %v302 = vsel %vm294, 1, 0
      %v303 = vsel %vm295, 1, 0
      %v304 = vsel %vm296, 1, 0
      %v305 = vsel %vm297, 1, 0
      %v306 = vsel %vm298, 1, 0
      %v307 = vsel %vm299, 1, 0
      %v308 = vcvt.s32.f32 %v300
      %v309 = vcvt.s32.f32 %v301
      %v310 = vcvt.s32.f32 %v302
      %v311 = vcvt.s32.f32 %v303
      %v312 = vcvt.s32.f32 %v304
      %v313 = vcvt.s32.f32 %v305
      %v314 = vcvt.s32.f32 %v306
      %v315 = vcvt.s32.f32 %v307
      %v316 = vadd.f32 %v280, %v308
      %v317 = vadd.f32 %v281, %v309
      %v318 = vadd.f32 %v282, %v310
      %v319 = vadd.f32 %v283, %v311
      %v320 = vadd.f32 %v284, %v312
      %v321 = vadd.f32 %v285, %v313
      %v322 = vadd.f32 %v286, %v314
      %v323 = vadd.f32 %v287, %v315
      %v324 = vlaneseq
      %v325 = vshrl.u32 %v324, 7
      %v326 = vsub.s32 7, %v325
      %v327 = vrot.slane %v71, %v326
      %vm328 = vcmp.eq.s32.totalorder %v327, %v63
      %vm329 = vcmp.eq.s32.totalorder %v327, %v64
      %vm330 = vcmp.eq.s32.totalorder %v327, %v65
      %vm331 = vcmp.eq.s32.totalorder %v327, %v66
      %vm332 = vcmp.eq.s32.totalorder %v327, %v67
      %vm333 = vcmp.eq.s32.totalorder %v327, %v68
      %vm334 = vcmp.eq.s32.totalorder %v327, %v69
      %vm335 = vcmp.eq.s32.totalorder %v327, %v70
      %v336 = vsel %vm328, 1, 0
      %v337 = vsel %vm329, 1, 0
      %v338 = vsel %vm330, 1, 0
      %v339 = vsel %vm331, 1, 0
      %v340 = vsel %vm332, 1, 0
      %v341 = vsel %vm333, 1, 0
      %v342 = vsel %vm334, 1, 0
      %v343 = vsel %vm335, 1, 0
      %v344 = vcvt.s32.f32 %v336
      %v345 = vcvt.s32.f32 %v337
      %v346 = vcvt.s32.f32 %v338
      %v347 = vcvt.s32.f32 %v339
      %v348 = vcvt.s32.f32 %v340
      %v349 = vcvt.s32.f32 %v341
      %v350 = vcvt.s32.f32 %v342
      %v351 = vcvt.s32.f32 %v343
      %v352 = vadd.f32 %v316, %v344
      %v353 = vadd.f32 %v317, %v345
      %v354 = vadd.f32 %v318, %v346
      %v355 = vadd.f32 %v319, %v347
      %v356 = vadd.f32 %v320, %v348
      %v357 = vadd.f32 %v321, %v349
      %v358 = vadd.f32 %v322, %v350
      %v359 = vadd.f32 %v323, %v351
      %v360 = vld [vmem:[#allocation8] sm:$0xff]
      %v361 = vld [vmem:[#allocation5] sm:$0xff]
      %v362 = vld [vmem:[#allocation5 + $0x8] sm:$0xff]
      %v363 = vld [vmem:[#allocation5 + $0x10] sm:$0xff]
      %v364 = vld [vmem:[#allocation5 + $0x18] sm:$0xff]
      %v365 = vld [vmem:[#allocation5 + $0x20] sm:$0xff]
      %v366 = vld [vmem:[#allocation5 + $0x28] sm:$0xff]
      %v367 = vld [vmem:[#allocation5 + $0x30] sm:$0xff]
      %v368 = vld [vmem:[#allocation5 + $0x38] sm:$0xff]
      %369 = vxpose.xlu0.b32.start [1/16] %v352, 128
      %370 = vxpose.xlu0.b32.cont [2/16] %v353, 128
      %371 = vxpose.xlu0.b32.cont [3/16] %v354, 128
      %372 = vxpose.xlu0.b32.cont [4/16] %v355, 128
      %373 = vxpose.xlu0.b32.cont [5/16] %v356, 128
      %374 = vxpose.xlu0.b32.cont [6/16] %v357, 128
      %375 = vxpose.xlu0.b32.cont [7/16] %v358, 128
      %376 = vxpose.xlu0.b32.cont [8/16] %v359, 128
      %377 = vxpose.xlu0.b32.cont [9/16] 0.0, 128
      %378 = vxpose.xlu0.b32.cont [10/16] 0.0, 128
      %379 = vxpose.xlu0.b32.cont [11/16] 0.0, 128
      %380 = vxpose.xlu0.b32.cont [12/16] 0.0, 128
      %381 = vxpose.xlu0.b32.cont [13/16] 0.0, 128
      %382 = vxpose.xlu0.b32.cont [14/16] 0.0, 128
      %383 = vxpose.xlu0.b32.cont [15/16] 0.0, 128
      %384 = vxpose.xlu0.b32.end [16/16] 0.0, 128
      %v385 = vpop.trf.xlu0
      %v386 = vpop.trf.xlu0
      %v387 = vpop.trf.xlu0
      %v388 = vpop.trf.xlu0
      %v389 = vpop.trf.xlu0
      %v390 = vpop.trf.xlu0
      %v391 = vpop.trf.xlu0
      %v392 = vpop.trf.xlu0
      %v393 = vpop.trf.xlu0
      %v394 = vpop.trf.xlu0
      %v395 = vpop.trf.xlu0
      %v396 = vpop.trf.xlu0
      %v397 = vpop.trf.xlu0
      %v398 = vpop.trf.xlu0
      %v399 = vpop.trf.xlu0
      %v400 = vpop.trf.xlu0
      %vm401 = vcmask 523264
      %v403 = vsel %vm401, %v385, 0
      %405 = vmatprep.subr.mxu0 0.0
      %406 = vmatpush1.msra.mxu0 %v361
      %407 = vmatprep.subr.mxu0 0.0
      %408 = vmatpush1.msra.mxu0 %v362
      %409 = vmatprep.subr.mxu0 0.0
      %410 = vmatpush1.msra.mxu0 %v363
      %411 = vmatprep.subr.mxu0 0.0
      %412 = vmatpush1.msra.mxu0 %v364
      %413 = vmatprep.subr.mxu0 0.0
      %414 = vmatpush1.msra.mxu0 %v365
      %415 = vmatprep.subr.mxu0 0.0
      %416 = vmatpush1.msra.mxu0 %v366
      %417 = vmatprep.subr.mxu0 0.0
      %418 = vmatpush1.msra.mxu0 %v367
      %419 = vmatprep.subr.mxu0 0.0
      %420 = vmatpush1.msra.mxu0 %v368
      %421 = vmatprep.subr.mxu0 0.0
      %422 = vmatpush1.msra.mxu0 0.0
      %423 = vmatprep.subr.mxu0 0.0
      %424 = vmatpush1.msra.mxu0 0.0
      %425 = vmatprep.subr.mxu0 0.0
      %426 = vmatpush1.msra.mxu0 0.0
      %427 = vmatprep.subr.mxu0 0.0
      %428 = vmatpush1.msra.mxu0 0.0
      %429 = vmatprep.subr.mxu0 0.0
      %430 = vmatpush1.msra.mxu0 0.0
      %431 = vmatprep.subr.mxu0 0.0
      %432 = vmatpush1.msra.mxu0 0.0
      %433 = vmatprep.subr.mxu0 0.0
      %434 = vmatpush1.msra.mxu0 0.0
      %435 = vmatprep.subr.mxu0 0.0
      %436 = vmatpush1.msra.mxu0 0.0
      %437 = vmatprep.subr.mxu0 0.0
      %438 = vmatpush1.msra.mxu0 0.0
      %439 = vmatprep.subr.mxu0 0.0
      %440 = vmatpush1.msra.mxu0 0.0
      %441 = vmatprep.subr.mxu0 0.0
      %442 = vmatpush1.msra.mxu0 0.0
      %443 = vmatprep.subr.mxu0 0.0
      %444 = vmatpush1.msra.mxu0 0.0
      %445 = vmatprep.subr.mxu0 0.0
      %446 = vmatpush1.msra.mxu0 0.0
      %447 = vmatprep.subr.mxu0 0.0
      %448 = vmatpush1.msra.mxu0 0.0
      %449 = vmatprep.subr.mxu0 0.0
      %450 = vmatpush1.msra.mxu0 0.0
      %451 = vmatprep.subr.mxu0 0.0
      %452 = vmatpush1.msra.mxu0 0.0
      %453 = vmatprep.subr.mxu0 0.0
      %454 = vmatpush1.msra.mxu0 0.0
      %455 = vmatprep.subr.mxu0 0.0
      %456 = vmatpush1.msra.mxu0 0.0
      %457 = vmatprep.subr.mxu0 0.0
      %458 = vmatpush1.msra.mxu0 0.0
      %459 = vmatprep.subr.mxu0 0.0
      %460 = vmatpush1.msra.mxu0 0.0
      %461 = vmatprep.subr.mxu0 0.0
      %462 = vmatpush1.msra.mxu0 0.0
      %463 = vmatprep.subr.mxu0 0.0
      %464 = vmatpush1.msra.mxu0 0.0
      %465 = vmatprep.subr.mxu0 0.0
      %466 = vmatpush1.msra.mxu0 0.0
      %467 = vmatprep.subr.mxu0 0.0
      %468 = vmatpush1.msra.mxu0 0.0
      %469 = vmatprep.mubr.f32.mxu0 0.0
      %470 = vmatmul.mubr.f32.gmra.mrb[0].mxu0 %v403
      %v471 = vpop.f32.mrb[0].mxu0
      %v472 = vadd.f32 0.0, %v471
      %v473 = vpop.f32.mrb[0].mxu0
      %474 = vdwg.mxu0
      %v475 = vadd.f32 %v360, %v472
      %476 = vst [vmem:[#allocation8] sm:$0xff] %v475
    $region25: #{tpu_custom_call.1} parent=1 // pred_fallthru
      _
    // Predicated region
    $region26: #{tpu_custom_call.1} parent=1 // pred_check
      %p477 = pneg %p41
    $region27: #{tpu_custom_call.1} parent=1 // pred_check_branch
      %479 = sbr.rel (%p477) target = $region29
    $region28: #{tpu_custom_call.1} parent=1 // pred_region
      %v480 = vld [vmem:[#allocation8] sm:$0xff]
      %v481 = vld [vmem:[%s3] sm:$0xff]
      %483 = vset.pattern.permute.xlu0 0
      %484 = vperm.xlu0 %483, %v481
      %v485 = vpop.permute.xlu0 %484
      %v487 = vmul.f32 %v480, %v485
      %488 = vst [vmem:[#allocation8] sm:$0xff] %v487
    $region29: #{tpu_custom_call.1} parent=1 // pred_fallthru
      _
    // Predicated region
    $region30: #{tpu_custom_call.1} parent=1 // pred_check
      _
    $region31: #{tpu_custom_call.1} parent=1 // pred_check_branch
      %490 = sbr.rel (0) target = $region33
    $region32: #{tpu_custom_call.1} parent=1 // pred_region
      %s492 = ssub.s32 128, 128
      %493 = vsyncadd [#allocation7], %s492
      %s495 = sshll.u32 [#allocation8], 4
      %s496 = int_to_ptr.vmem [resolvable:$true] %s495
      %498 = dma.vmem_to_hbm [thread:$0]  %s496, 128, %s5, [#allocation7]
    $region33: #{tpu_custom_call.1} parent=1 // pred_fallthru
      _
    // Predicated region
    $region34: #{tpu_custom_call.1} parent=1 // pred_check
      _
    $region35: #{tpu_custom_call.1} parent=1 // pred_check_branch
      %500 = sbr.rel (0) target = $region37
    $region36: #{tpu_custom_call.1} parent=1 // pred_region
      %501 = dma.done [#allocation7], 128
    $region37: #{tpu_custom_call.1} parent=1 // pred_fallthru
      _
    %502 = vsyncpa [#allocation6], 1
    %503 = vsyncpa [#allocation7], 1

</llo_original>
